<compile_context>
chip_gen: v7x
topology: tpu7x:2x2x1
jax: 0.10.0
libtpu: 0.0.40
codegen_flags: <defaults>
</compile_context>

<pallas_src>
import functools

import jax
import jax.numpy as jnp
from jax.experimental import pallas as pl
from jax.experimental.pallas import tpu as pltpu


def _round_up(x, m):
    return ((x + m - 1) // m) * m


def mssd_kernel(packed_ref, out_ref, acc_ref, *, batch_size, tile_b,
                lambda_pos, lambda_rot, normalize):
    step = pl.program_id(0)

    @pl.when(step == 0)
    def _init():
        acc_ref[...] = jnp.zeros_like(acc_ref)

    x = packed_ref[...]                       # (16, TILE_B) f32
    pp = x[0:3, :]                            # pred position  (3, T)
    pq = x[3:7, :]                            # pred quat wxyz (4, T)
    tp = x[7:10, :]                           # target position
    tq = x[10:14, :]                          # target quat
    mr = x[14:15, :]                          # max radius     (1, T)
    dia = x[15:16, :]                         # diameter       (1, T)

    # ---- position error: ||pred_pos - tgt_pos|| per sample (per lane). ----
    d = pp - tp
    d2 = d * d
    pos_sq = d2[0:1, :] + d2[1:2, :] + d2[2:3, :]   # sublane-slice adds (VPU only)
    pos_err = jnp.sqrt(pos_sq)                      # (1, T)

    # ---- rotation error via quaternion-dot identity (no quat->matrix). ----
    pt = pq * tq
    dot = pt[0:1, :] + pt[1:2, :] + pt[2:3, :] + pt[3:4, :]
    p2 = pq * pq
    t2 = tq * tq
    nsq_p = p2[0:1, :] + p2[1:2, :] + p2[2:3, :] + p2[3:4, :]
    nsq_t = t2[0:1, :] + t2[1:2, :] + t2[2:3, :] + t2[3:4, :]
    inv_nsq = 1.0 / jnp.maximum(nsq_p * nsq_t, 1e-30)
    dhat2 = jnp.minimum(dot * dot * inv_nsq, 1.0)
    # sin(acos(2*dhat^2 - 1)/2) == sqrt(1 - dhat^2)  (exact for the clipped range)
    rot_err = 2.0 * mr * jnp.sqrt(jnp.maximum(1.0 - dhat2, 0.0))

    if normalize:
        inv_dia = 1.0 / dia                  # exact (keeps 1e-4 parity with reference)
        pos_err = pos_err * inv_dia
        rot_err = rot_err * inv_dia

    # ---- mask padded lanes, accumulate lane-wise partial sums (VPU). ----
    lane = jax.lax.broadcasted_iota(jnp.int32, (1, tile_b), 1)
    valid = (lane + step * tile_b) < batch_size
    pos_err = jnp.where(valid, pos_err, 0.0)
    rot_err = jnp.where(valid, rot_err, 0.0)

    acc_ref[0:1, :] = acc_ref[0:1, :] + pos_err
    acc_ref[1:2, :] = acc_ref[1:2, :] + rot_err

    # ---- finalize: batch means + weighted total, one lane-dense store. ----
    @pl.when(step == pl.num_programs(0) - 1)
    def _finalize():
        inv_b = 1.0 / float(batch_size)
        mean_pos = jnp.sum(acc_ref[0:1, :]) * inv_b     # single cross-lane reduce
        mean_rot = jnp.sum(acc_ref[1:2, :]) * inv_b
        total = lambda_pos * mean_pos + lambda_rot * mean_rot
        lane128 = jax.lax.broadcasted_iota(jnp.int32, (1, 128), 1)
        out = jnp.where(lane128 == 0, total,
              jnp.where(lane128 == 1, mean_pos,
              jnp.where(lane128 == 2, mean_rot, 0.0)))
        out_ref[...] = out                              # unmasked 128-lane store


def additive_mssd_loss(pred_pos, pred_quat, tgt_pos, tgt_quat, max_radius,
                       diameter, lambda_pos=1.0, lambda_rot=1.0, normalize=True):
    """Returns (total loss scalar, dict of mean position/rotation losses).

    All returned values are device arrays (no host sync) so the whole function
    is jittable / differentiable-friendly.
    """
    f32 = jnp.float32
    B = pred_pos.shape[0]
    tile_b = min(4096, _round_up(B, 128))    # lanes per grid step (multiple of 128)
    b_pad = _round_up(B, tile_b)
    grid_n = b_pad // tile_b

    # Pack everything into one lane-dense slab: features on sublanes, batch on lanes.
    slab = jnp.concatenate([
        pred_pos.astype(f32).T,                       # (3, B)
        pred_quat.astype(f32).T,                      # (4, B)
        tgt_pos.astype(f32).T,                        # (3, B)
        tgt_quat.astype(f32).T,                       # (4, B)
        jnp.asarray(max_radius, f32)[None, :],        # (1, B)
        jnp.asarray(diameter, f32)[None, :],          # (1, B)
    ], axis=0)                                        # (16, B)
    if b_pad > B:
        # Pad with 1.0 (safe quats / diameters); padded lanes are masked anyway.
        slab = jnp.concatenate([slab, jnp.ones((16, b_pad - B), f32)], axis=1)

    kernel = functools.partial(
        mssd_kernel, batch_size=B, tile_b=tile_b,
        lambda_pos=float(lambda_pos), lambda_rot=float(lambda_rot),
        normalize=bool(normalize))

    out = pl.pallas_call(
        kernel,
        grid=(grid_n,),
        in_specs=[pl.BlockSpec((16, tile_b), lambda i: (0, i))],
        out_specs=pl.BlockSpec((1, 128), lambda i: (0, 0)),
        out_shape=jax.ShapeDtypeStruct((1, 128), f32),
        scratch_shapes=[pltpu.VMEM((2, tile_b), f32)],
        compiler_params=pltpu.CompilerParams(
            dimension_semantics=("arbitrary",)),   # carried accumulator across tiles
    )(slab)

    total = out[0, 0]
    loss_dict = {"position_loss": out[0, 1], "rotation_loss": out[0, 2]}
    return total, loss_dict


# JIT-wrapped entry point (loss-weight / normalize flags are static).
additive_mssd_loss_jit = jax.jit(
    additive_mssd_loss, static_argnames=("lambda_pos", "lambda_rot", "normalize"))


def _reference(pred_pos, pred_quat, tgt_pos, tgt_quat, max_radius, diameter,
               lambda_pos=1.0, lambda_rot=1.0, normalize=True):
    """Pure-JAX reference mirroring the PyTorch forward (quaternion branch)."""
    def q2m(q):
        q = q / jnp.linalg.norm(q)
        w, x, y, z = q
        return jnp.array([
            [1 - 2 * (y * y + z * z), 2 * (x * y - w * z), 2 * (x * z + w * y)],
            [2 * (x * y + w * z), 1 - 2 * (x * x + z * z), 2 * (y * z - w * x)],
            [2 * (x * z - w * y), 2 * (y * z + w * x), 1 - 2 * (x * x + y * y)],
        ], jnp.float32)

    B = pred_pos.shape[0]
    pos_l, rot_l = [], []
    for i in range(B):
        pe = jnp.linalg.norm(pred_pos[i] - tgt_pos[i])
        rel = q2m(pred_quat[i]) @ q2m(tgt_quat[i]).T
        c = jnp.clip((jnp.trace(rel) - 1.0) / 2.0, -1.0, 1.0)
        re = 2.0 * max_radius[i] * jnp.sin(jnp.arccos(c) / 2.0)
        if normalize:
            pe = pe / diameter[i]
            re = re / diameter[i]
        pos_l.append(pe)
        rot_l.append(re)
    pos_l = jnp.stack(pos_l)
    rot_l = jnp.stack(rot_l)
    total = jnp.mean(lambda_pos * pos_l + lambda_rot * rot_l)
    return total, jnp.mean(pos_l), jnp.mean(rot_l)


if __name__ == "__main__":
    key = jax.random.PRNGKey(0)
    k_pc1, k_pc2, k_pp, k_pq, k_tp, k_tq, k_big = jax.random.split(key, 7)

    # Deterministic synthetic "model database": 2 objects, 100 sampled points each.
    point_clouds = {
        "obj_1": jax.random.normal(k_pc1, (100, 3), jnp.float32) * 0.5,
        "obj_2": jax.random.normal(k_pc2, (100, 3), jnp.float32) * 0.8,
    }
    max_radius_db = {oid: float(jnp.max(jnp.linalg.norm(p, axis=1)))
                     for oid, p in point_clouds.items()}
    diameters_db = {oid: 2.0 * max_radius_db[oid] for oid in point_clouds}

    # Batch of 2 samples.
    B = 2
    object_ids = ["obj_1", "obj_2"]
    pred_pos = jax.random.normal(k_pp, (B, 3), jnp.float32)
    pred_quat = jax.random.normal(k_pq, (B, 4), jnp.float32)
    tgt_pos = jax.random.normal(k_tp, (B, 3), jnp.float32)
    tgt_quat = jax.random.normal(k_tq, (B, 4), jnp.float32)

    # Glue: per-sample object lookups (falls back to 1.0 like the torch module).
    max_radius = jnp.array([max_radius_db.get(oid, 1.0) for oid in object_ids],
                           jnp.float32)
    diameter = jnp.array([diameters_db.get(oid, 1.0) for oid in object_ids],
                         jnp.float32)

    total, comps = additive_mssd_loss_jit(pred_pos, pred_quat, tgt_pos, tgt_quat,
                                          max_radius, diameter)
    total = jax.block_until_ready(total)

    ref_total, ref_pos, ref_rot = _reference(pred_pos, pred_quat, tgt_pos, tgt_quat,
                                             max_radius, diameter)
    assert abs(float(total) - float(ref_total)) < 1e-4, (float(total), float(ref_total))
    assert abs(float(comps["position_loss"]) - float(ref_pos)) < 1e-4
    assert abs(float(comps["rotation_loss"]) - float(ref_rot)) < 1e-4

    # Second check: non-trivial batch (exercises lane masking of the padded slab).
    B2 = 5
    ks = jax.random.split(k_big, 6)
    pp2 = jax.random.normal(ks[0], (B2, 3), jnp.float32)
    pq2 = jax.random.normal(ks[1], (B2, 4), jnp.float32)
    tp2 = jax.random.normal(ks[2], (B2, 3), jnp.float32)
    tq2 = jax.random.normal(ks[3], (B2, 4), jnp.float32)
    mr2 = jax.random.uniform(ks[4], (B2,), jnp.float32, 0.5, 2.0)
    di2 = jax.random.uniform(ks[5], (B2,), jnp.float32, 0.5, 2.0)
    tot2, comps2 = additive_mssd_loss_jit(pp2, pq2, tp2, tq2, mr2, di2)
    tot2 = jax.block_until_ready(tot2)
    ref2, _, _ = _reference(pp2, pq2, tp2, tq2, mr2, di2)
    assert abs(float(tot2) - float(ref2)) < 1e-4, (float(tot2), float(ref2))

    print("KERNEL_OK")
</pallas_src>

<mosaic_0001>
module attributes {stable_mosaic.version = 11 : i64} {
  func.func @mssd_kernel(%arg0: i32, %arg1: memref<16x128xf32, #tpu.memory_space<vmem>>, %arg2: memref<1x128xf32, #tpu.memory_space<vmem>>, %arg3: memref<2x128xf32, #tpu.memory_space<vmem>>) attributes {dimension_semantics = [#tpu.dimension_semantics<arbitrary>], iteration_bounds = array<i64: 1>, scalar_prefetch = 0 : i64, scratch_operands = 1 : i64, tpu.core_type = #tpu.core_type<tc>, window_params = [{transform_indices = @transform_0, window_bounds = array<i64: 16, 128>}, {pipeline_mode = #tpu.pipeline_mode<synchronous>, transform_indices = @transform_1, window_bounds = array<i64: 1, 128>}]} {
    %c0_i32 = arith.constant 0 : i32
    %0 = arith.cmpi eq, %arg0, %c0_i32 : i32
    %1 = arith.extui %0 : i1 to i32
    %c0_i32_0 = arith.constant 0 : i32
    %2 = arith.cmpi ne, %1, %c0_i32_0 : i32
    scf.if %2 {
      %cst_19 = arith.constant 0.000000e+00 : f32
      %82 = vector.broadcast %cst_19 : f32 to vector<2x128xf32>
      %c0_20 = arith.constant 0 : index
      %c0_21 = arith.constant 0 : index
      %83 = vector.load %arg3[%c0_20, %c0_21] : memref<2x128xf32, #tpu.memory_space<vmem>>, vector<2x128xf32>
      tpu.vector_store %arg3[%c0_20, %c0_21], %82 {strides = array<i32>} : memref<2x128xf32, #tpu.memory_space<vmem>>, vector<2x128xf32>,
    } else {
    }
    %c0 = arith.constant 0 : index
    %c0_1 = arith.constant 0 : index
    %3 = vector.load %arg1[%c0, %c0_1] : memref<16x128xf32, #tpu.memory_space<vmem>>, vector<16x128xf32>
    %4 = vector.extract_strided_slice %3 {offsets = [0, 0], sizes = [3, 128], strides = [1, 1]} : vector<16x128xf32> to vector<3x128xf32>
    %5 = vector.extract_strided_slice %3 {offsets = [3, 0], sizes = [4, 128], strides = [1, 1]} : vector<16x128xf32> to vector<4x128xf32>
    %6 = vector.extract_strided_slice %3 {offsets = [7, 0], sizes = [3, 128], strides = [1, 1]} : vector<16x128xf32> to vector<3x128xf32>
    %7 = vector.extract_strided_slice %3 {offsets = [10, 0], sizes = [4, 128], strides = [1, 1]} : vector<16x128xf32> to vector<4x128xf32>
    %8 = vector.extract_strided_slice %3 {offsets = [14, 0], sizes = [1, 128], strides = [1, 1]} : vector<16x128xf32> to vector<1x128xf32>
    %9 = vector.extract_strided_slice %3 {offsets = [15, 0], sizes = [1, 128], strides = [1, 1]} : vector<16x128xf32> to vector<1x128xf32>
    %10 = arith.subf %4, %6 : vector<3x128xf32>
    %11 = arith.mulf %10, %10 : vector<3x128xf32>
    %12 = vector.extract_strided_slice %11 {offsets = [0, 0], sizes = [1, 128], strides = [1, 1]} : vector<3x128xf32> to vector<1x128xf32>
    %13 = vector.extract_strided_slice %11 {offsets = [1, 0], sizes = [1, 128], strides = [1, 1]} : vector<3x128xf32> to vector<1x128xf32>
    %14 = arith.addf %12, %13 : vector<1x128xf32>
    %15 = vector.extract_strided_slice %11 {offsets = [2, 0], sizes = [1, 128], strides = [1, 1]} : vector<3x128xf32> to vector<1x128xf32>
    %16 = arith.addf %14, %15 : vector<1x128xf32>
    %17 = math.sqrt %16 : vector<1x128xf32>
    %18 = arith.mulf %5, %7 : vector<4x128xf32>
    %19 = vector.extract_strided_slice %18 {offsets = [0, 0], sizes = [1, 128], strides = [1, 1]} : vector<4x128xf32> to vector<1x128xf32>
    %20 = vector.extract_strided_slice %18 {offsets = [1, 0], sizes = [1, 128], strides = [1, 1]} : vector<4x128xf32> to vector<1x128xf32>
    %21 = arith.addf %19, %20 : vector<1x128xf32>
    %22 = vector.extract_strided_slice %18 {offsets = [2, 0], sizes = [1, 128], strides = [1, 1]} : vector<4x128xf32> to vector<1x128xf32>
    %23 = arith.addf %21, %22 : vector<1x128xf32>
    %24 = vector.extract_strided_slice %18 {offsets = [3, 0], sizes = [1, 128], strides = [1, 1]} : vector<4x128xf32> to vector<1x128xf32>
    %25 = arith.addf %23, %24 : vector<1x128xf32>
    %26 = arith.mulf %5, %5 : vector<4x128xf32>
    %27 = arith.mulf %7, %7 : vector<4x128xf32>
    %28 = vector.extract_strided_slice %26 {offsets = [0, 0], sizes = [1, 128], strides = [1, 1]} : vector<4x128xf32> to vector<1x128xf32>
    %29 = vector.extract_strided_slice %26 {offsets = [1, 0], sizes = [1, 128], strides = [1, 1]} : vector<4x128xf32> to vector<1x128xf32>
    %30 = arith.addf %28, %29 : vector<1x128xf32>
    %31 = vector.extract_strided_slice %26 {offsets = [2, 0], sizes = [1, 128], strides = [1, 1]} : vector<4x128xf32> to vector<1x128xf32>
    %32 = arith.addf %30, %31 : vector<1x128xf32>
    %33 = vector.extract_strided_slice %26 {offsets = [3, 0], sizes = [1, 128], strides = [1, 1]} : vector<4x128xf32> to vector<1x128xf32>
    %34 = arith.addf %32, %33 : vector<1x128xf32>
    %35 = vector.extract_strided_slice %27 {offsets = [0, 0], sizes = [1, 128], strides = [1, 1]} : vector<4x128xf32> to vector<1x128xf32>
    %36 = vector.extract_strided_slice %27 {offsets = [1, 0], sizes = [1, 128], strides = [1, 1]} : vector<4x128xf32> to vector<1x128xf32>
    %37 = arith.addf %35, %36 : vector<1x128xf32>
    %38 = vector.extract_strided_slice %27 {offsets = [2, 0], sizes = [1, 128], strides = [1, 1]} : vector<4x128xf32> to vector<1x128xf32>
    %39 = arith.addf %37, %38 : vector<1x128xf32>
    %40 = vector.extract_strided_slice %27 {offsets = [3, 0], sizes = [1, 128], strides = [1, 1]} : vector<4x128xf32> to vector<1x128xf32>
    %41 = arith.addf %39, %40 : vector<1x128xf32>
    %42 = arith.mulf %34, %41 : vector<1x128xf32>
    %cst = arith.constant 1.000000e-30 : f32
    %43 = vector.broadcast %cst : f32 to vector<1x128xf32>
    %44 = arith.maximumf %42, %43 : vector<1x128xf32>
    %cst_2 = arith.constant 1.000000e+00 : f32
    %45 = vector.broadcast %cst_2 : f32 to vector<1x128xf32>
    %46 = arith.divf %45, %44 : vector<1x128xf32>
    %47 = arith.mulf %25, %25 : vector<1x128xf32>
    %48 = arith.mulf %47, %46 : vector<1x128xf32>
    %cst_3 = arith.constant 1.000000e+00 : f32
    %49 = vector.broadcast %cst_3 : f32 to vector<1x128xf32>
    %50 = arith.minimumf %48, %49 : vector<1x128xf32>
    %cst_4 = arith.constant 2.000000e+00 : f32
    %51 = vector.broadcast %cst_4 : f32 to vector<1x128xf32>
    %52 = arith.mulf %51, %8 : vector<1x128xf32>
    %cst_5 = arith.constant 1.000000e+00 : f32
    %53 = vector.broadcast %cst_5 : f32 to vector<1x128xf32>
    %54 = arith.subf %53, %50 : vector<1x128xf32>
    %cst_6 = arith.constant 0.000000e+00 : f32
    %55 = vector.broadcast %cst_6 : f32 to vector<1x128xf32>
    %56 = arith.maximumf %54, %55 : vector<1x128xf32>
    %57 = math.sqrt %56 : vector<1x128xf32>
    %58 = arith.mulf %52, %57 : vector<1x128xf32>
    %cst_7 = arith.constant 1.000000e+00 : f32
    %59 = vector.broadcast %cst_7 : f32 to vector<1x128xf32>
    %60 = arith.divf %59, %9 : vector<1x128xf32>
    %61 = arith.mulf %17, %60 : vector<1x128xf32>
    %62 = arith.mulf %58, %60 : vector<1x128xf32>
    %63 = tpu.iota {dimensions = array<i32: 1>} : vector<1x128xi32>
    %c128_i32 = arith.constant 128 : i32
    %64 = arith.muli %arg0, %c128_i32 : i32
    %65 = vector.broadcast %64 : i32 to vector<1x128xi32>
    %66 = arith.addi %63, %65 : vector<1x128xi32>
    %c2_i32 = arith.constant 2 : i32
    %67 = vector.broadcast %c2_i32 : i32 to vector<1x128xi32>
    %68 = arith.cmpi slt, %66, %67 : vector<1x128xi32>
    %cst_8 = arith.constant 0.000000e+00 : f32
    %69 = vector.broadcast %cst_8 : f32 to vector<1x128xf32>
    %70 = arith.select %68, %61, %69 : vector<1x128xi1>, vector<1x128xf32>
    %cst_9 = arith.constant 0.000000e+00 : f32
    %71 = vector.broadcast %cst_9 : f32 to vector<1x128xf32>
    %72 = arith.select %68, %62, %71 : vector<1x128xi1>, vector<1x128xf32>
    %c0_10 = arith.constant 0 : index
    %c0_11 = arith.constant 0 : index
    %73 = vector.load %arg3[%c0_10, %c0_11] : memref<2x128xf32, #tpu.memory_space<vmem>>, vector<1x128xf32>
    %74 = arith.addf %73, %70 : vector<1x128xf32>
    %c0_12 = arith.constant 0 : index
    %c0_13 = arith.constant 0 : index
    %75 = vector.load %arg3[%c0_12, %c0_13] : memref<2x128xf32, #tpu.memory_space<vmem>>, vector<1x128xf32>
    tpu.vector_store %arg3[%c0_12, %c0_13], %74 {strides = array<i32>} : memref<2x128xf32, #tpu.memory_space<vmem>>, vector<1x128xf32>,
    %c1 = arith.constant 1 : index
    %c0_14 = arith.constant 0 : index
    %76 = vector.load %arg3[%c1, %c0_14] : memref<2x128xf32, #tpu.memory_space<vmem>>, vector<1x128xf32>
    %77 = arith.addf %76, %72 : vector<1x128xf32>
    %c1_15 = arith.constant 1 : index
    %c0_16 = arith.constant 0 : index
    %78 = vector.load %arg3[%c1_15, %c0_16] : memref<2x128xf32, #tpu.memory_space<vmem>>, vector<1x128xf32>
    tpu.vector_store %arg3[%c1_15, %c0_16], %77 {strides = array<i32>} : memref<2x128xf32, #tpu.memory_space<vmem>>, vector<1x128xf32>,
    %c0_i32_17 = arith.constant 0 : i32
    %79 = arith.cmpi eq, %arg0, %c0_i32_17 : i32
    %80 = arith.extui %79 : i1 to i32
    %c0_i32_18 = arith.constant 0 : i32
    %81 = arith.cmpi ne, %80, %c0_i32_18 : i32
    scf.if %81 {
      %c0_19 = arith.constant 0 : index
      %c0_20 = arith.constant 0 : index
      %82 = vector.load %arg3[%c0_19, %c0_20] : memref<2x128xf32, #tpu.memory_space<vmem>>, vector<1x128xf32>
      %83 = vector.shape_cast %82 : vector<1x128xf32> to vector<1x1x128xf32>
      %cst_21 = arith.constant dense<0.000000e+00> : vector<1xf32>
      %84 = vector.multi_reduction <add>, %83, %cst_21 [1, 2] : vector<1x1x128xf32> to vector<1xf32>
      %85 = vector.shape_cast %84 : vector<1xf32> to vector<1x1x1xf32>
      %86 = vector.extract %85[0, 0, 0] : f32 from vector<1x1x1xf32>
      %cst_22 = arith.constant 5.000000e-01 : f32
      %87 = arith.mulf %86, %cst_22 : f32
      %c1_23 = arith.constant 1 : index
      %c0_24 = arith.constant 0 : index
      %88 = vector.load %arg3[%c1_23, %c0_24] : memref<2x128xf32, #tpu.memory_space<vmem>>, vector<1x128xf32>
      %89 = vector.shape_cast %88 : vector<1x128xf32> to vector<1x1x128xf32>
      %cst_25 = arith.constant dense<0.000000e+00> : vector<1xf32>
      %90 = vector.multi_reduction <add>, %89, %cst_25 [1, 2] : vector<1x1x128xf32> to vector<1xf32>
      %91 = vector.shape_cast %90 : vector<1xf32> to vector<1x1x1xf32>
      %92 = vector.extract %91[0, 0, 0] : f32 from vector<1x1x1xf32>
      %cst_26 = arith.constant 5.000000e-01 : f32
      %93 = arith.mulf %92, %cst_26 : f32
      %cst_27 = arith.constant 1.000000e+00 : f32
      %94 = arith.mulf %cst_27, %87 : f32
      %cst_28 = arith.constant 1.000000e+00 : f32
      %95 = arith.mulf %cst_28, %93 : f32
      %96 = arith.addf %94, %95 : f32
      %97 = tpu.iota {dimensions = array<i32: 1>} : vector<1x128xi32>
      %c0_i32_29 = arith.constant 0 : i32
      %98 = vector.broadcast %c0_i32_29 : i32 to vector<1x128xi32>
      %99 = arith.cmpi eq, %97, %98 : vector<1x128xi32>
      %c1_i32 = arith.constant 1 : i32
      %100 = vector.broadcast %c1_i32 : i32 to vector<1x128xi32>
      %101 = arith.cmpi eq, %97, %100 : vector<1x128xi32>
      %c2_i32_30 = arith.constant 2 : i32
      %102 = vector.broadcast %c2_i32_30 : i32 to vector<1x128xi32>
      %103 = arith.cmpi eq, %97, %102 : vector<1x128xi32>
      %cst_31 = arith.constant 0.000000e+00 : f32
      %104 = vector.broadcast %93 : f32 to vector<1x128xf32>
      %105 = vector.broadcast %cst_31 : f32 to vector<1x128xf32>
      %106 = arith.select %103, %104, %105 : vector<1x128xi1>, vector<1x128xf32>
      %107 = vector.broadcast %87 : f32 to vector<1x128xf32>
      %108 = arith.select %101, %107, %106 : vector<1x128xi1>, vector<1x128xf32>
      %109 = vector.broadcast %96 : f32 to vector<1x128xf32>
      %110 = arith.select %99, %109, %108 : vector<1x128xi1>, vector<1x128xf32>
      %c0_32 = arith.constant 0 : index
      %c0_33 = arith.constant 0 : index
      %111 = vector.load %arg2[%c0_32, %c0_33] : memref<1x128xf32, #tpu.memory_space<vmem>>, vector<1x128xf32>
      tpu.vector_store %arg2[%c0_32, %c0_33], %110 {strides = array<i32>} : memref<1x128xf32, #tpu.memory_space<vmem>>, vector<1x128xf32>,
    } else {
    }
    return
  }
  func.func @transform_0(%arg0: i32) -> (i32, i32) {
    %c0_i32 = arith.constant 0 : i32
    %c0_i32_0 = arith.constant 0 : i32
    return %c0_i32, %arg0 : i32, i32
  }
  func.func @transform_1(%arg0: i32) -> (i32, i32) {
    %c0_i32 = arith.constant 0 : i32
    %c0_i32_0 = arith.constant 0 : i32
    %c0_i32_1 = arith.constant 0 : i32
    return %c0_i32, %c0_i32_0 : i32, i32
  }
}

</mosaic_0001>

<llo_original>
// kernel: additive_mssd_loss.1
$region0: #{additive_mssd_loss.1}
  #allocation0 [shape = 'u32[]', space=smem, size = 0x4, offset = 0x4, fixed_abs, tag = 'smem constant byte address 0x4 - core index']
  #allocation1 [shape = 'u32[144,128]{1,0:T(1,128)}', space=vmem, size = 0x12000, scoped, tag = 'internal scratch']
  #allocation2 [shape = 'f32[2,128]{1,0:T(2,128)}', space=vmem, size = 0x400, scoped, tag = 'scratch operand']
  %s0 = inlined_call_operand.vmem [shape: f32[16,128], index: 0, kind: input, shape index: {}]
  %s1 = inlined_call_operand.vmem [shape: f32[1,128], index: 1, kind: output, shape index: {}]
  %s2 = sld [smem:[#allocation0]]
  $region22: #{additive_mssd_loss.1} parent=0
    _
  %s4 = ssub.s32 1, %s2
  %s5 = scalar_select 0, %s4, %s2
  // Predicated region
  $region2: #{additive_mssd_loss.1} parent=0 // pred_check
    _
  $region3: #{additive_mssd_loss.1} parent=0 // pred_check_branch
    %7 = sbr.rel (0) target = $region5
  $region4: #{additive_mssd_loss.1} parent=0 // pred_region
    _
  $region5: #{additive_mssd_loss.1} parent=0 // pred_fallthru
    _
  %p8 = scmp.eq.s32.totalorder 0, 0
  // Predicated region
  $region6: #{additive_mssd_loss.1} parent=0 // pred_check
    %p9 = pneg %p8
  $region7: #{additive_mssd_loss.1} parent=0 // pred_check_branch
    %11 = sbr.rel (%p9) target = $region9
  $region8: #{additive_mssd_loss.1} parent=0 // pred_region
    %12 = vst [vmem:[#allocation2] sm:$0x3] 0.0
  $region9: #{additive_mssd_loss.1} parent=0 // pred_fallthru
    _
  %v13 = vld [vmem:[%s0] sm:$0xff]
  %v14 = vld [vmem:[%s0 + $0x8] sm:$0xff]
  %vm17 = vcmask 1040384
  %v18 = vrot.slane %v13, 7
  %v19 = vrot.slane %v14, 7
  %v20 = vsel %vm17, %v18, %v19
  %v22 = vsub.f32 %v13, %v20
  %v23 = vmul.f32 %v22, %v22
  %v25 = vrot.slane %v23, 1
  %v27 = vadd.f32 %v23, %v25
  %v28 = vrot.slane %v23, 2
  %v30 = vadd.f32 %v27, %v28
  %v31 = vrsqrt.pop %v30
  %v32 = vmul.f32 %v30, %v31
  %vm33 = vcmp.eq.f32.partialorder %v30, inf
  %v34 = vsel %vm33, %v30, %v32
  %vm35 = vcmp.eq.f32.partialorder %v30, 0.0
  %v36 = vand.u32 %v30, 2147483648
  %v37 = vsel %vm35, %v36, %v34
  %v39 = vmul.f32 %v13, %v19
  %v41 = vrot.slane %v39, 1
  %v43 = vadd.f32 %v39, %v41
  %v44 = vrot.slane %v39, 2
  %v46 = vadd.f32 %v43, %v44
  %v47 = vrot.slane %v39, 3
  %v49 = vadd.f32 %v46, %v47
  %v50 = vmul.f32 %v13, %v13
  %v51 = vmul.f32 %v14, %v14
  %v53 = vrot.slane %v50, 1
  %v55 = vadd.f32 %v50, %v53
  %v56 = vrot.slane %v50, 2
  %v58 = vadd.f32 %v55, %v56
  %v59 = vrot.slane %v50, 3
  %v61 = vadd.f32 %v58, %v59
  %v63 = vrot.slane %v51, 1
  %v65 = vadd.f32 %v51, %v63
  %v66 = vrot.slane %v51, 2
  %v68 = vadd.f32 %v65, %v66
  %v69 = vrot.slane %v51, 3
  %v71 = vadd.f32 %v68, %v69
  %v73 = vrot.slane %v71, 7
  %v75 = vmul.f32 %v61, %v73
  %v76 = vmax.f32 %v75, 1e-30
  %v77 = vrcp.pop %v76
  %v78 = vmul.f32 1.0, %v77
  %v79 = vmul.f32 %v49, %v49
  %v80 = vmul.f32 %v79, %v78
  %v81 = vmin.f32 %v80, 1.0
  %v82 = vmul.f32 %v14, 2.0
  %v83 = vsub.f32 1.0, %v81
  %v84 = vmax.f32 %v83, 0.0
  %v85 = vrsqrt.pop %v84
  %v86 = vmul.f32 %v84, %v85
  %vm87 = vcmp.eq.f32.partialorder %v84, inf
  %v88 = vsel %vm87, %v84, %v86
  %vm89 = vcmp.eq.f32.partialorder %v84, 0.0
  %v90 = vand.u32 %v84, 2147483648
  %v91 = vsel %vm89, %v90, %v88
  %v93 = vrot.slane %v91, 5
  %v95 = vmul.f32 %v82, %v93
  %v96 = vrcp.pop %v14
  %v97 = vmul.f32 1.0, %v96
  %v99 = vrot.slane %v97, 7
  %v101 = vmul.f32 %v37, %v99
  %v102 = vrot.slane %v97, 1
  %v104 = vmul.f32 %v95, %v102
  %v105 = vlaneseq
  %v106 = vand.u32 %v105, 127
  %s107 = smul.u32 0, 128
  %v108 = vstv %s107
  %v109 = vadd.s32 %v106, %v108
  %vm110 = vcmp.lt.s32.totalorder %v109, 2
  %v111 = vsel %vm110, %v101, 0.0
  %v112 = vsel %vm110, %v104, 0.0
  %v113 = vld [vmem:[#allocation2] sm:$0x1]
  %v114 = vadd.f32 %v113, %v111
  %115 = vst [vmem:[#allocation2] sm:$0x1] %v114
  %v116 = vld [vmem:[#allocation2 + $0x1] sm:$0x1]
  %v118 = vrot.slane %v112, 6
  %v120 = vadd.f32 %v116, %v118
  %121 = vst [vmem:[#allocation2 + $0x1] sm:$0x1] %v120
  // Predicated region
  $region10: #{additive_mssd_loss.1} parent=0 // pred_check
    %p122 = pneg %p8
  $region11: #{additive_mssd_loss.1} parent=0 // pred_check_branch
    %124 = sbr.rel (%p122) target = $region13
  $region12: #{additive_mssd_loss.1} parent=0 // pred_region
    %v125 = vld [vmem:[#allocation2] sm:$0x1]
    %v126 = vsel %vm17, %v125, 0.0
    %127 = vadd.xlane.f32.xlu0 %v126
    %v128 = vpop.xlane.xlu0 %127
    %v129 = vrot.slane %v128, 4
    %v130 = vadd.f32 %v128, %v129
    %v131 = vrot.slane %v130, 2
    %v132 = vadd.f32 %v130, %v131
    %v133 = vrot.slane %v132, 1
    %v134 = vadd.f32 %v132, %v133
    %s135 = vtos %v134
    %s136 = smul.f32 %s135, 0.5
    %v137 = vld [vmem:[#allocation2 + $0x1] sm:$0x1]
    %v138 = vsel %vm17, %v137, 0.0
    %139 = vadd.xlane.f32.xlu0 %v138
    %v140 = vpop.xlane.xlu0 %139
    %v141 = vrot.slane %v140, 4
    %v142 = vadd.f32 %v140, %v141
    %v143 = vrot.slane %v142, 2
    %v144 = vadd.f32 %v142, %v143
    %v145 = vrot.slane %v144, 1
    %v146 = vadd.f32 %v144, %v145
    %s147 = vtos %v146
    %s148 = smul.f32 %s147, 0.5
    %s149 = sadd.f32 %s136, %s148
    %vm150 = vcmp.eq.s32.totalorder %v106, 0
    %vm151 = vcmp.eq.s32.totalorder %v106, 1
    %vm152 = vcmp.eq.s32.totalorder %v106, 2
    %v153 = vstv %s148
    %v154 = vsel %vm152, %v153, 0.0
    %v155 = vstv %s136
    %v156 = vsel %vm151, %v155, %v154
    %v157 = vstv %s149
    %v158 = vsel %vm150, %v157, %v156
    %159 = vst [vmem:[%s1] sm:$0x1] %v158
  $region13: #{additive_mssd_loss.1} parent=0 // pred_fallthru
    _
  // Predicated region
  $region14: #{additive_mssd_loss.1} parent=0 // pred_check
    _
  $region15: #{additive_mssd_loss.1} parent=0 // pred_check_branch
    %161 = sbr.rel (0) target = $region17
  $region16: #{additive_mssd_loss.1} parent=0 // pred_region
    _
  $region17: #{additive_mssd_loss.1} parent=0 // pred_fallthru
    _
  // Predicated region
  $region18: #{additive_mssd_loss.1} parent=0 // pred_check
    _
  $region19: #{additive_mssd_loss.1} parent=0 // pred_check_branch
    %163 = sbr.rel (0) target = $region21
  $region20: #{additive_mssd_loss.1} parent=0 // pred_region
    _
  $region21: #{additive_mssd_loss.1} parent=0 // pred_fallthru
    _

</llo_original>
